<compile_context>
chip_gen: v7x
topology: tpu7x:2x2x1
jax: 0.10.0
libtpu: 0.0.40
codegen_flags: <defaults>
</compile_context>

<pallas_src>
import functools

import jax
import jax.numpy as jnp
from jax.experimental import pallas as pl
from jax.experimental.pallas import tpu as pltpu


def sage_model_kernel(x_ref, adj_ref,
                      ws1_ref, wn1_ref, b1_ref,
                      ws2_ref, wn2_ref, b2_ref,
                      out_ref):
    """Fused GraphSAGE (2 layers + graph mean readout) for one small graph."""
    x = x_ref[...]            # (N, C_in)
    adj = adj_ref[...]        # (N, N)  adj[dst, src]

    # In-degree and its reciprocal (EUP). deg==0 rows: sum is 0, so the mean is
    # 0 regardless of the clamp, matching DGL's zero for isolated destinations.
    deg = jnp.sum(adj, axis=-1, keepdims=True)                     # (N, 1)
    inv_deg = pl.reciprocal(jnp.maximum(deg, 1.0), approx=True)    # (N, 1)

    # ---- conv1: SAGEConv(in -> hid, 'mean') + ReLU -------------------------
    neigh1 = jnp.dot(adj, x, preferred_element_type=jnp.float32) * inv_deg
    h = (jnp.dot(x, ws1_ref[...], preferred_element_type=jnp.float32)
         + jnp.dot(neigh1, wn1_ref[...], preferred_element_type=jnp.float32)
         + b1_ref[...])
    h = jnp.maximum(h, 0.0)                                        # (N, hid)

    # ---- conv2: SAGEConv(hid -> out, 'mean') -------------------------------
    neigh2 = jnp.dot(adj, h, preferred_element_type=jnp.float32) * inv_deg
    h2 = (jnp.dot(h, ws2_ref[...], preferred_element_type=jnp.float32)
          + jnp.dot(neigh2, wn2_ref[...], preferred_element_type=jnp.float32)
          + b2_ref[...])                                           # (N, out)

    # ---- dgl.mean_nodes(g, 'h') for a single-graph batch -> (1, out) -------
    # TODO(synk): multi-graph batching (segment mean over a batch vector) not
    # modeled; this assumes the whole adjacency is one graph.
    out_ref[...] = jnp.mean(h2, axis=0, keepdims=True)


def sage_model_forward(params, adj, x):
    n = x.shape[0]
    out_feats = params["ws2"].shape[1]
    vmem = pl.BlockSpec(memory_space=pltpu.MemorySpace.VMEM)
    return pl.pallas_call(
        sage_model_kernel,
        out_shape=jax.ShapeDtypeStruct((1, out_feats), jnp.float32),
        in_specs=[vmem] * 8,
        out_specs=vmem,
    )(x, adj,
      params["ws1"], params["wn1"], params["b1"],
      params["ws2"], params["wn2"], params["b2"])


def sage_model_ref(params, adj, x):
    """Pure-JAX reference of the same forward pass."""
    deg = jnp.maximum(jnp.sum(adj, axis=-1, keepdims=True), 1.0)
    neigh1 = (adj @ x) / deg
    h = x @ params["ws1"] + neigh1 @ params["wn1"] + params["b1"]
    h = jnp.maximum(h, 0.0)
    neigh2 = (adj @ h) / deg
    h2 = h @ params["ws2"] + neigh2 @ params["wn2"] + params["b2"]
    return jnp.mean(h2, axis=0, keepdims=True)


def init_sage_params(key, in_feats, hid_feats, out_feats):
    ks = jax.random.split(key, 4)

    def xavier(k, fan_in, fan_out):
        lim = (6.0 / (fan_in + fan_out)) ** 0.5
        return jax.random.uniform(k, (fan_in, fan_out), jnp.float32, -lim, lim)

    return {
        # conv1: fc_self / fc_neigh (in -> hid), additive bias (DGL default).
        "ws1": xavier(ks[0], in_feats, hid_feats),
        "wn1": xavier(ks[1], in_feats, hid_feats),
        "b1": jnp.zeros((1, hid_feats), jnp.float32),
        # conv2: fc_self / fc_neigh (hid -> out).
        "ws2": xavier(ks[2], hid_feats, out_feats),
        "wn2": xavier(ks[3], hid_feats, out_feats),
        "b2": jnp.zeros((1, out_feats), jnp.float32),
    }


if __name__ == "__main__":
    N, in_feats, hid_feats, out_feats = 16, 8, 8, 4

    key = jax.random.PRNGKey(0)
    k_feat, k_adj, k_par = jax.random.split(key, 3)

    x = jax.random.normal(k_feat, (N, in_feats), jnp.float32)
    # Random directed graph + self-loops (guarantees in-degree >= 1, the usual
    # DGL preprocessing for SAGE/GNN graphs).
    rand_adj = (jax.random.uniform(k_adj, (N, N)) < 0.25).astype(jnp.float32)
    adj = jnp.maximum(rand_adj, jnp.eye(N, dtype=jnp.float32))

    params = init_sage_params(k_par, in_feats, hid_feats, out_feats)

    out = sage_model_forward(params, adj, x)
    jax.block_until_ready(out)

    ref = sage_model_ref(params, adj, x)
    assert out.shape == (1, out_feats)
    assert bool(jnp.all(jnp.isfinite(out)))
    # approx reciprocal -> loose tolerance.
    assert bool(jnp.allclose(out, ref, rtol=2e-2, atol=1e-3)), (out, ref)
    print("KERNEL_OK")
</pallas_src>

<mosaic_0001>
module attributes {stable_mosaic.version = 11 : i64} {
  func.func @sage_model_kernel(%arg0: memref<16x8xf32, #tpu.memory_space<vmem>>, %arg1: memref<16x16xf32, #tpu.memory_space<vmem>>, %arg2: memref<8x8xf32, #tpu.memory_space<vmem>>, %arg3: memref<8x8xf32, #tpu.memory_space<vmem>>, %arg4: memref<1x8xf32, #tpu.memory_space<vmem>>, %arg5: memref<8x4xf32, #tpu.memory_space<vmem>>, %arg6: memref<8x4xf32, #tpu.memory_space<vmem>>, %arg7: memref<1x4xf32, #tpu.memory_space<vmem>>, %arg8: memref<1x4xf32, #tpu.memory_space<vmem>>) attributes {dimension_semantics = [], scalar_prefetch = 0 : i64, scratch_operands = 0 : i64, tpu.core_type = #tpu.core_type<tc>} {
    %c0 = arith.constant 0 : index
    %c0_0 = arith.constant 0 : index
    %0 = vector.load %arg0[%c0, %c0_0] : memref<16x8xf32, #tpu.memory_space<vmem>>, vector<16x8xf32>
    %c0_1 = arith.constant 0 : index
    %c0_2 = arith.constant 0 : index
    %1 = vector.load %arg1[%c0_1, %c0_2] : memref<16x16xf32, #tpu.memory_space<vmem>>, vector<16x16xf32>
    %cst = arith.constant dense<0.000000e+00> : vector<16xf32>
    %2 = vector.multi_reduction <add>, %1, %cst [1] : vector<16x16xf32> to vector<16xf32>
    %3 = vector.shape_cast %2 : vector<16xf32> to vector<16x1xf32>
    %cst_3 = arith.constant 1.000000e+00 : f32
    %4 = vector.broadcast %cst_3 : f32 to vector<16x1xf32>
    %5 = arith.maximumf %3, %4 : vector<16x1xf32>
    %6 = tpu.reciprocal %5 {approx = true} : vector<16x1xf32> -> vector<16x1xf32>
    %cst_4 = arith.constant dense<0.000000e+00> : vector<16x8xf32>
    %7 = tpu.matmul %1, %0, %cst_4 {dimension_numbers = #tpu.dot_dimension_numbers<[1], [0], [0], [1], [0, 0, 1, 1], [], []>} : vector<16x16xf32>, vector<16x8xf32>, vector<16x8xf32> -> vector<16x8xf32>
    %8 = vector.broadcast %6 : vector<16x1xf32> to vector<16x8xf32>
    %9 = arith.mulf %7, %8 : vector<16x8xf32>
    %c0_5 = arith.constant 0 : index
    %c0_6 = arith.constant 0 : index
    %10 = vector.load %arg2[%c0_5, %c0_6] : memref<8x8xf32, #tpu.memory_space<vmem>>, vector<8x8xf32>
    %cst_7 = arith.constant dense<0.000000e+00> : vector<16x8xf32>
    %11 = tpu.matmul %0, %10, %cst_7 {dimension_numbers = #tpu.dot_dimension_numbers<[1], [0], [0], [1], [0, 0, 1, 1], [], []>} : vector<16x8xf32>, vector<8x8xf32>, vector<16x8xf32> -> vector<16x8xf32>
    %c0_8 = arith.constant 0 : index
    %c0_9 = arith.constant 0 : index
    %12 = vector.load %arg3[%c0_8, %c0_9] : memref<8x8xf32, #tpu.memory_space<vmem>>, vector<8x8xf32>
    %cst_10 = arith.constant dense<0.000000e+00> : vector<16x8xf32>
    %13 = tpu.matmul %9, %12, %cst_10 {dimension_numbers = #tpu.dot_dimension_numbers<[1], [0], [0], [1], [0, 0, 1, 1], [], []>} : vector<16x8xf32>, vector<8x8xf32>, vector<16x8xf32> -> vector<16x8xf32>
    %14 = arith.addf %11, %13 : vector<16x8xf32>
    %c0_11 = arith.constant 0 : index
    %c0_12 = arith.constant 0 : index
    %15 = vector.load %arg4[%c0_11, %c0_12] : memref<1x8xf32, #tpu.memory_space<vmem>>, vector<1x8xf32>
    %16 = vector.broadcast %15 : vector<1x8xf32> to vector<16x8xf32>
    %17 = arith.addf %14, %16 : vector<16x8xf32>
    %cst_13 = arith.constant 0.000000e+00 : f32
    %18 = vector.broadcast %cst_13 : f32 to vector<16x8xf32>
    %19 = arith.maximumf %17, %18 : vector<16x8xf32>
    %cst_14 = arith.constant dense<0.000000e+00> : vector<16x8xf32>
    %20 = tpu.matmul %1, %19, %cst_14 {dimension_numbers = #tpu.dot_dimension_numbers<[1], [0], [0], [1], [0, 0, 1, 1], [], []>} : vector<16x16xf32>, vector<16x8xf32>, vector<16x8xf32> -> vector<16x8xf32>
    %21 = vector.broadcast %6 : vector<16x1xf32> to vector<16x8xf32>
    %22 = arith.mulf %20, %21 : vector<16x8xf32>
    %c0_15 = arith.constant 0 : index
    %c0_16 = arith.constant 0 : index
    %23 = vector.load %arg5[%c0_15, %c0_16] : memref<8x4xf32, #tpu.memory_space<vmem>>, vector<8x4xf32>
    %cst_17 = arith.constant dense<0.000000e+00> : vector<16x4xf32>
    %24 = tpu.matmul %19, %23, %cst_17 {dimension_numbers = #tpu.dot_dimension_numbers<[1], [0], [0], [1], [0, 0, 1, 1], [], []>} : vector<16x8xf32>, vector<8x4xf32>, vector<16x4xf32> -> vector<16x4xf32>
    %c0_18 = arith.constant 0 : index
    %c0_19 = arith.constant 0 : index
    %25 = vector.load %arg6[%c0_18, %c0_19] : memref<8x4xf32, #tpu.memory_space<vmem>>, vector<8x4xf32>
    %cst_20 = arith.constant dense<0.000000e+00> : vector<16x4xf32>
    %26 = tpu.matmul %22, %25, %cst_20 {dimension_numbers = #tpu.dot_dimension_numbers<[1], [0], [0], [1], [0, 0, 1, 1], [], []>} : vector<16x8xf32>, vector<8x4xf32>, vector<16x4xf32> -> vector<16x4xf32>
    %27 = arith.addf %24, %26 : vector<16x4xf32>
    %c0_21 = arith.constant 0 : index
    %c0_22 = arith.constant 0 : index
    %28 = vector.load %arg7[%c0_21, %c0_22] : memref<1x4xf32, #tpu.memory_space<vmem>>, vector<1x4xf32>
    %29 = vector.broadcast %28 : vector<1x4xf32> to vector<16x4xf32>
    %30 = arith.addf %27, %29 : vector<16x4xf32>
    %cst_23 = arith.constant dense<0.000000e+00> : vector<4xf32>
    %31 = vector.multi_reduction <add>, %30, %cst_23 [0] : vector<16x4xf32> to vector<4xf32>
    %32 = vector.shape_cast %31 : vector<4xf32> to vector<1x4xf32>
    %cst_24 = arith.constant 1.600000e+01 : f32
    %33 = vector.broadcast %cst_24 : f32 to vector<1x4xf32>
    %34 = arith.divf %32, %33 : vector<1x4xf32>
    %c0_25 = arith.constant 0 : index
    %c0_26 = arith.constant 0 : index
    %35 = vector.load %arg8[%c0_25, %c0_26] : memref<1x4xf32, #tpu.memory_space<vmem>>, vector<1x4xf32>
    tpu.vector_store %arg8[%c0_25, %c0_26], %34 {strides = array<i32>} : memref<1x4xf32, #tpu.memory_space<vmem>>, vector<1x4xf32>,
    return
  }
}

</mosaic_0001>

<llo_original>
// kernel: tpu_custom_call.1
$region0: #{tpu_custom_call.1}
  #allocation0 [shape = 'u32[]', space=smem, size = 0x4, offset = 0x4, fixed_abs, tag = 'smem constant byte address 0x4 - core index']
  #allocation1 [shape = 'u32[144,128]{1,0:T(1,128)}', space=vmem, size = 0x12000, scoped, tag = 'internal scratch']
  %s0 = inlined_call_operand.vmem [shape: f32[16,8], index: 0, kind: input, shape index: {}]
  %s1 = inlined_call_operand.vmem [shape: f32[16,16], index: 1, kind: input, shape index: {}]
  %s2 = inlined_call_operand.vmem [shape: f32[8,8], index: 2, kind: input, shape index: {}]
  %s3 = inlined_call_operand.vmem [shape: f32[8,8], index: 3, kind: input, shape index: {}]
  %s4 = inlined_call_operand.vmem [shape: f32[1,8], index: 4, kind: input, shape index: {}]
  %s5 = inlined_call_operand.vmem [shape: f32[8,4], index: 5, kind: input, shape index: {}]
  %s6 = inlined_call_operand.vmem [shape: f32[8,4], index: 6, kind: input, shape index: {}]
  %s7 = inlined_call_operand.vmem [shape: f32[1,4], index: 7, kind: input, shape index: {}]
  %s8 = inlined_call_operand.hbm [shape: f32[1,4], index: 8, kind: output, shape index: {}]
  %s9 = sld [smem:[#allocation0]]
  $region42: #{tpu_custom_call.1} parent=0
    _
  %s11 = ssub.s32 1, %s9
  %s12 = scalar_select 0, %s11, %s9
  $region1: #{tpu_custom_call.1} parent=0
    #allocation2 [shape = 'u8[512]{0}', space=vmem, size = 0x400, scoped, tag = 'output window, operand 0, single buffered']
    #allocation3 [shape = 's32[1]{0}', space=sflag, size = 0x4, scoped, tag = 'scoped memory for tpu_custom_call.1']
    %13 = vsyncpa [#allocation3], 0
    // Predicated region
    $region2: #{tpu_custom_call.1} parent=1 // pred_check
      _
    $region3: #{tpu_custom_call.1} parent=1 // pred_check_branch
      %15 = sbr.rel (0) target = $region5
    $region4: #{tpu_custom_call.1} parent=1 // pred_region
      _
    $region5: #{tpu_custom_call.1} parent=1 // pred_fallthru
      _
    // Predicated region
    $region6: #{tpu_custom_call.1} parent=1 // pred_check
      _
    $region7: #{tpu_custom_call.1} parent=1 // pred_check_branch
      %17 = sbr.rel (0) target = $region9
    $region8: #{tpu_custom_call.1} parent=1 // pred_region
      _
    $region9: #{tpu_custom_call.1} parent=1 // pred_fallthru
      _
    // Predicated region
    $region10: #{tpu_custom_call.1} parent=1 // pred_check
      _
    $region11: #{tpu_custom_call.1} parent=1 // pred_check_branch
      %19 = sbr.rel (0) target = $region13
    $region12: #{tpu_custom_call.1} parent=1 // pred_region
      _
    $region13: #{tpu_custom_call.1} parent=1 // pred_fallthru
      _
    // Predicated region
    $region14: #{tpu_custom_call.1} parent=1 // pred_check
      _
    $region15: #{tpu_custom_call.1} parent=1 // pred_check_branch
      %21 = sbr.rel (0) target = $region17
    $region16: #{tpu_custom_call.1} parent=1 // pred_region
      _
    $region17: #{tpu_custom_call.1} parent=1 // pred_fallthru
      _
    // Predicated region
    $region18: #{tpu_custom_call.1} parent=1 // pred_check
      _
    $region19: #{tpu_custom_call.1} parent=1 // pred_check_branch
      %23 = sbr.rel (0) target = $region21
    $region20: #{tpu_custom_call.1} parent=1 // pred_region
      _
    $region21: #{tpu_custom_call.1} parent=1 // pred_fallthru
      _
    // Predicated region
    $region22: #{tpu_custom_call.1} parent=1 // pred_check
      _
    $region23: #{tpu_custom_call.1} parent=1 // pred_check_branch
      %25 = sbr.rel (0) target = $region25
    $region24: #{tpu_custom_call.1} parent=1 // pred_region
      _
    $region25: #{tpu_custom_call.1} parent=1 // pred_fallthru
      _
    // Predicated region
    $region26: #{tpu_custom_call.1} parent=1 // pred_check
      _
    $region27: #{tpu_custom_call.1} parent=1 // pred_check_branch
      %27 = sbr.rel (0) target = $region29
    $region28: #{tpu_custom_call.1} parent=1 // pred_region
      _
    $region29: #{tpu_custom_call.1} parent=1 // pred_fallthru
      _
    // Predicated region
    $region30: #{tpu_custom_call.1} parent=1 // pred_check
      _
    $region31: #{tpu_custom_call.1} parent=1 // pred_check_branch
      %29 = sbr.rel (0) target = $region33
    $region32: #{tpu_custom_call.1} parent=1 // pred_region
      _
    $region33: #{tpu_custom_call.1} parent=1 // pred_fallthru
      _
    %v30 = vld [vmem:[%s0] sm:$0xff]
    %v31 = vld [vmem:[%s0 + $0x8] sm:$0xff]
    %v32 = vld [vmem:[%s1] sm:$0xff]
    %v33 = vld [vmem:[%s1 + $0x8] sm:$0xff]
    %vm34 = vcmask 130048
    %v35 = vsel %vm34, %v32, 0.0
    %36 = vadd.xlane.f32.xlu0 %v35
    %v37 = vpop.xlane.xlu0 %36
    %v38 = vsel %vm34, %v33, 0.0
    %39 = vadd.xlane.f32.xlu0 %v38
    %v40 = vpop.xlane.xlu0 %39
    %v41 = vmax.f32 %v37, 1.0
    %v42 = vmax.f32 %v40, 1.0
    %v43 = vrcp.pop %v41
    %v44 = vrcp.pop %v42
    %v46 = vsel %vm34, %v32, 0
    %v49 = vsel %vm34, %v33, 0
    %51 = vmatprep.subr.mxu0 0.0
    %52 = vmatpush1.msra.mxu0 %v30
    %53 = vmatprep.subr.mxu0 0.0
    %54 = vmatpush1.msra.mxu0 %v31
    %55 = vmatprep.subr.mxu0 0.0
    %56 = vmatpush1.msra.mxu0 0.0
    %57 = vmatprep.subr.mxu0 0.0
    %58 = vmatpush1.msra.mxu0 0.0
    %59 = vmatprep.subr.mxu0 0.0
    %60 = vmatpush1.msra.mxu0 0.0
    %61 = vmatprep.subr.mxu0 0.0
    %62 = vmatpush1.msra.mxu0 0.0
    %63 = vmatprep.subr.mxu0 0.0
    %64 = vmatpush1.msra.mxu0 0.0
    %65 = vmatprep.subr.mxu0 0.0
    %66 = vmatpush1.msra.mxu0 0.0
    %67 = vmatprep.subr.mxu0 0.0
    %68 = vmatpush1.msra.mxu0 0.0
    %69 = vmatprep.subr.mxu0 0.0
    %70 = vmatpush1.msra.mxu0 0.0
    %71 = vmatprep.subr.mxu0 0.0
    %72 = vmatpush1.msra.mxu0 0.0
    %73 = vmatprep.subr.mxu0 0.0
    %74 = vmatpush1.msra.mxu0 0.0
    %75 = vmatprep.subr.mxu0 0.0
    %76 = vmatpush1.msra.mxu0 0.0
    %77 = vmatprep.subr.mxu0 0.0
    %78 = vmatpush1.msra.mxu0 0.0
    %79 = vmatprep.subr.mxu0 0.0
    %80 = vmatpush1.msra.mxu0 0.0
    %81 = vmatprep.subr.mxu0 0.0
    %82 = vmatpush1.msra.mxu0 0.0
    %83 = vmatprep.subr.mxu0 0.0
    %84 = vmatpush1.msra.mxu0 0.0
    %85 = vmatprep.subr.mxu0 0.0
    %86 = vmatpush1.msra.mxu0 0.0
    %87 = vmatprep.subr.mxu0 0.0
    %88 = vmatpush1.msra.mxu0 0.0
    %89 = vmatprep.subr.mxu0 0.0
    %90 = vmatpush1.msra.mxu0 0.0
    %91 = vmatprep.subr.mxu0 0.0
    %92 = vmatpush1.msra.mxu0 0.0
    %93 = vmatprep.subr.mxu0 0.0
    %94 = vmatpush1.msra.mxu0 0.0
    %95 = vmatprep.subr.mxu0 0.0
    %96 = vmatpush1.msra.mxu0 0.0
    %97 = vmatprep.subr.mxu0 0.0
    %98 = vmatpush1.msra.mxu0 0.0
    %99 = vmatprep.subr.mxu0 0.0
    %100 = vmatpush1.msra.mxu0 0.0
    %101 = vmatprep.subr.mxu0 0.0
    %102 = vmatpush1.msra.mxu0 0.0
    %103 = vmatprep.subr.mxu0 0.0
    %104 = vmatpush1.msra.mxu0 0.0
    %105 = vmatprep.subr.mxu0 0.0
    %106 = vmatpush1.msra.mxu0 0.0
    %107 = vmatprep.subr.mxu0 0.0
    %108 = vmatpush1.msra.mxu0 0.0
    %109 = vmatprep.subr.mxu0 0.0
    %110 = vmatpush1.msra.mxu0 0.0
    %111 = vmatprep.subr.mxu0 0.0
    %112 = vmatpush1.msra.mxu0 0.0
    %113 = vmatprep.subr.mxu0 0.0
    %114 = vmatpush1.msra.mxu0 0.0
    %115 = vmatprep.mubr.f32.mxu0 0.0
    %116 = vmatmul.mubr.f32.gmra.mrb[0].mxu0 %v46
    %v117 = vpop.f32.mrb[0].mxu0
    %v118 = vadd.f32 0.0, %v117
    %v119 = vpop.f32.mrb[0].mxu0
    %120 = vmatprep.mubr.f32.mxu0 0.0
    %121 = vmatmul.mubr.f32.gmra.mrb[0].mxu0 %v49
    %v122 = vpop.f32.mrb[0].mxu0
    %v123 = vadd.f32 0.0, %v122
    %v124 = vpop.f32.mrb[0].mxu0
    %125 = vdwg.mxu0
    %v126 = vmul.f32 %v118, %v43
    %v127 = vmul.f32 %v123, %v44
    %v128 = vld [vmem:[%s2] sm:$0xff]
    %v129 = vld [vmem:[%s3] sm:$0xff]
    %vm130 = vcmask 64512
    %v132 = vsel %vm130, %v126, 0
    %v135 = vsel %vm130, %v127, 0
    %137 = vmatprep.subr.mxu0 0.0
    %138 = vmatpush1.msra.mxu0 %v129
    %139 = vmatprep.subr.mxu0 0.0
    %140 = vmatpush1.msra.mxu0 0.0
    %141 = vmatprep.subr.mxu0 0.0
    %142 = vmatpush1.msra.mxu0 0.0
    %143 = vmatprep.subr.mxu0 0.0
    %144 = vmatpush1.msra.mxu0 0.0
    %145 = vmatprep.subr.mxu0 0.0
    %146 = vmatpush1.msra.mxu0 0.0
    %147 = vmatprep.subr.mxu0 0.0
    %148 = vmatpush1.msra.mxu0 0.0
    %149 = vmatprep.subr.mxu0 0.0
    %150 = vmatpush1.msra.mxu0 0.0
    %151 = vmatprep.subr.mxu0 0.0
    %152 = vmatpush1.msra.mxu0 0.0
    %153 = vmatprep.subr.mxu0 0.0
    %154 = vmatpush1.msra.mxu0 0.0
    %155 = vmatprep.subr.mxu0 0.0
    %156 = vmatpush1.msra.mxu0 0.0
    %157 = vmatprep.subr.mxu0 0.0
    %158 = vmatpush1.msra.mxu0 0.0
    %159 = vmatprep.subr.mxu0 0.0
    %160 = vmatpush1.msra.mxu0 0.0
    %161 = vmatprep.subr.mxu0 0.0
    %162 = vmatpush1.msra.mxu0 0.0
    %163 = vmatprep.subr.mxu0 0.0
    %164 = vmatpush1.msra.mxu0 0.0
    %165 = vmatprep.subr.mxu0 0.0
    %166 = vmatpush1.msra.mxu0 0.0
    %167 = vmatprep.subr.mxu0 0.0
    %168 = vmatpush1.msra.mxu0 0.0
    %169 = vmatprep.subr.mxu0 0.0
    %170 = vmatpush1.msra.mxu0 0.0
    %171 = vmatprep.subr.mxu0 0.0
    %172 = vmatpush1.msra.mxu0 0.0
    %173 = vmatprep.subr.mxu0 0.0
    %174 = vmatpush1.msra.mxu0 0.0
    %175 = vmatprep.subr.mxu0 0.0
    %176 = vmatpush1.msra.mxu0 0.0
    %177 = vmatprep.subr.mxu0 0.0
    %178 = vmatpush1.msra.mxu0 0.0
    %179 = vmatprep.subr.mxu0 0.0
    %180 = vmatpush1.msra.mxu0 0.0
    %181 = vmatprep.subr.mxu0 0.0
    %182 = vmatpush1.msra.mxu0 0.0
    %183 = vmatprep.subr.mxu0 0.0
    %184 = vmatpush1.msra.mxu0 0.0
    %185 = vmatprep.subr.mxu0 0.0
    %186 = vmatpush1.msra.mxu0 0.0
    %187 = vmatprep.subr.mxu0 0.0
    %188 = vmatpush1.msra.mxu0 0.0
    %189 = vmatprep.subr.mxu0 0.0
    %190 = vmatpush1.msra.mxu0 0.0
    %191 = vmatprep.subr.mxu0 0.0
    %192 = vmatpush1.msra.mxu0 0.0
    %193 = vmatprep.subr.mxu0 0.0
    %194 = vmatpush1.msra.mxu0 0.0
    %195 = vmatprep.subr.mxu0 0.0
    %196 = vmatpush1.msra.mxu0 0.0
    %197 = vmatprep.subr.mxu0 0.0
    %198 = vmatpush1.msra.mxu0 0.0
    %199 = vmatprep.subr.mxu0 0.0
    %200 = vmatpush1.msra.mxu0 0.0
    %201 = vmatprep.mubr.f32.mxu0 0.0
    %202 = vmatmul.mubr.f32.gmra.mrb[0].mxu0 %v132
    %v203 = vpop.f32.mrb[0].mxu0
    %v204 = vadd.f32 0.0, %v203
    %v205 = vpop.f32.mrb[0].mxu0
    %206 = vmatprep.mubr.f32.mxu0 0.0
    %207 = vmatmul.mubr.f32.gmra.mrb[0].mxu0 %v135
    %v208 = vpop.f32.mrb[0].mxu0
    %v209 = vadd.f32 0.0, %v208
    %v210 = vpop.f32.mrb[0].mxu0
    %211 = vdwg.mxu0
    %v213 = vsel %vm130, %v30, 0
    %v216 = vsel %vm130, %v31, 0
    %218 = vmatprep.subr.mxu0 0.0
    %219 = vmatpush1.msra.mxu0 %v128
    %220 = vmatprep.subr.mxu0 0.0
    %221 = vmatpush1.msra.mxu0 0.0
    %222 = vmatprep.subr.mxu0 0.0
    %223 = vmatpush1.msra.mxu0 0.0
    %224 = vmatprep.subr.mxu0 0.0
    %225 = vmatpush1.msra.mxu0 0.0
    %226 = vmatprep.subr.mxu0 0.0
    %227 = vmatpush1.msra.mxu0 0.0
    %228 = vmatprep.subr.mxu0 0.0
    %229 = vmatpush1.msra.mxu0 0.0
    %230 = vmatprep.subr.mxu0 0.0
    %231 = vmatpush1.msra.mxu0 0.0
    %232 = vmatprep.subr.mxu0 0.0
    %233 = vmatpush1.msra.mxu0 0.0
    %234 = vmatprep.subr.mxu0 0.0
    %235 = vmatpush1.msra.mxu0 0.0
    %236 = vmatprep.subr.mxu0 0.0
    %237 = vmatpush1.msra.mxu0 0.0
    %238 = vmatprep.subr.mxu0 0.0
    %239 = vmatpush1.msra.mxu0 0.0
    %240 = vmatprep.subr.mxu0 0.0
    %241 = vmatpush1.msra.mxu0 0.0
    %242 = vmatprep.subr.mxu0 0.0
    %243 = vmatpush1.msra.mxu0 0.0
    %244 = vmatprep.subr.mxu0 0.0
    %245 = vmatpush1.msra.mxu0 0.0
    %246 = vmatprep.subr.mxu0 0.0
    %247 = vmatpush1.msra.mxu0 0.0
    %248 = vmatprep.subr.mxu0 0.0
    %249 = vmatpush1.msra.mxu0 0.0
    %250 = vmatprep.subr.mxu0 0.0
    %251 = vmatpush1.msra.mxu0 0.0
    %252 = vmatprep.subr.mxu0 0.0
    %253 = vmatpush1.msra.mxu0 0.0
    %254 = vmatprep.subr.mxu0 0.0
    %255 = vmatpush1.msra.mxu0 0.0
    %256 = vmatprep.subr.mxu0 0.0
    %257 = vmatpush1.msra.mxu0 0.0
    %258 = vmatprep.subr.mxu0 0.0
    %259 = vmatpush1.msra.mxu0 0.0
    %260 = vmatprep.subr.mxu0 0.0
    %261 = vmatpush1.msra.mxu0 0.0
    %262 = vmatprep.subr.mxu0 0.0
    %263 = vmatpush1.msra.mxu0 0.0
    %264 = vmatprep.subr.mxu0 0.0
    %265 = vmatpush1.msra.mxu0 0.0
    %266 = vmatprep.subr.mxu0 0.0
    %267 = vmatpush1.msra.mxu0 0.0
    %268 = vmatprep.subr.mxu0 0.0
    %269 = vmatpush1.msra.mxu0 0.0
    %270 = vmatprep.subr.mxu0 0.0
    %271 = vmatpush1.msra.mxu0 0.0
    %272 = vmatprep.subr.mxu0 0.0
    %273 = vmatpush1.msra.mxu0 0.0
    %274 = vmatprep.subr.mxu0 0.0
    %275 = vmatpush1.msra.mxu0 0.0
    %276 = vmatprep.subr.mxu0 0.0
    %277 = vmatpush1.msra.mxu0 0.0
    %278 = vmatprep.subr.mxu0 0.0
    %279 = vmatpush1.msra.mxu0 0.0
    %280 = vmatprep.subr.mxu0 0.0
    %281 = vmatpush1.msra.mxu0 0.0
    %282 = vmatprep.mubr.f32.mxu0 0.0
    %283 = vmatmul.mubr.f32.gmra.mrb[0].mxu0 %v213
    %v284 = vpop.f32.mrb[0].mxu0
    %v285 = vadd.f32 %v204, %v284
    %v286 = vpop.f32.mrb[0].mxu0
    %287 = vmatprep.mubr.f32.mxu0 0.0
    %288 = vmatmul.mubr.f32.gmra.mrb[0].mxu0 %v216
    %v289 = vpop.f32.mrb[0].mxu0
    %v290 = vadd.f32 %v209, %v289
    %v291 = vpop.f32.mrb[0].mxu0
    %292 = vdwg.mxu0
    %v293 = vld [vmem:[%s4] sm:$0x1]
    %v295 = vlaneseq
    %v296 = vshrl.u32 %v295, 7
    %v297 = vsub.s32 0, %v296
    %v298 = vrot.slane %v293, %v297
    %v300 = vadd.f32 %v285, %v298
    %v301 = vadd.f32 %v290, %v298
    %v302 = vmax.f32 %v300, 0.0
    %v303 = vmax.f32 %v301, 0.0
    %304 = vmatprep.subr.mxu0 0.0
    %305 = vmatpush1.msra.mxu0 %v302
    %306 = vmatprep.subr.mxu0 0.0
    %307 = vmatpush1.msra.mxu0 %v303
    %308 = vmatprep.subr.mxu0 0.0
    %309 = vmatpush1.msra.mxu0 0.0
    %310 = vmatprep.subr.mxu0 0.0
    %311 = vmatpush1.msra.mxu0 0.0
    %312 = vmatprep.subr.mxu0 0.0
    %313 = vmatpush1.msra.mxu0 0.0
    %314 = vmatprep.subr.mxu0 0.0
    %315 = vmatpush1.msra.mxu0 0.0
    %316 = vmatprep.subr.mxu0 0.0
    %317 = vmatpush1.msra.mxu0 0.0
    %318 = vmatprep.subr.mxu0 0.0
    %319 = vmatpush1.msra.mxu0 0.0
    %320 = vmatprep.subr.mxu0 0.0
    %321 = vmatpush1.msra.mxu0 0.0
    %322 = vmatprep.subr.mxu0 0.0
    %323 = vmatpush1.msra.mxu0 0.0
    %324 = vmatprep.subr.mxu0 0.0
    %325 = vmatpush1.msra.mxu0 0.0
    %326 = vmatprep.subr.mxu0 0.0
    %327 = vmatpush1.msra.mxu0 0.0
    %328 = vmatprep.subr.mxu0 0.0
    %329 = vmatpush1.msra.mxu0 0.0
    %330 = vmatprep.subr.mxu0 0.0
    %331 = vmatpush1.msra.mxu0 0.0
    %332 = vmatprep.subr.mxu0 0.0
    %333 = vmatpush1.msra.mxu0 0.0
    %334 = vmatprep.subr.mxu0 0.0
    %335 = vmatpush1.msra.mxu0 0.0
    %336 = vmatprep.subr.mxu0 0.0
    %337 = vmatpush1.msra.mxu0 0.0
    %338 = vmatprep.subr.mxu0 0.0
    %339 = vmatpush1.msra.mxu0 0.0
    %340 = vmatprep.subr.mxu0 0.0
    %341 = vmatpush1.msra.mxu0 0.0
    %342 = vmatprep.subr.mxu0 0.0
    %343 = vmatpush1.msra.mxu0 0.0
    %344 = vmatprep.subr.mxu0 0.0
    %345 = vmatpush1.msra.mxu0 0.0
    %346 = vmatprep.subr.mxu0 0.0
    %347 = vmatpush1.msra.mxu0 0.0
    %348 = vmatprep.subr.mxu0 0.0
    %349 = vmatpush1.msra.mxu0 0.0
    %350 = vmatprep.subr.mxu0 0.0
    %351 = vmatpush1.msra.mxu0 0.0
    %352 = vmatprep.subr.mxu0 0.0
    %353 = vmatpush1.msra.mxu0 0.0
    %354 = vmatprep.subr.mxu0 0.0
    %355 = vmatpush1.msra.mxu0 0.0
    %356 = vmatprep.subr.mxu0 0.0
    %357 = vmatpush1.msra.mxu0 0.0
    %358 = vmatprep.subr.mxu0 0.0
    %359 = vmatpush1.msra.mxu0 0.0
    %360 = vmatprep.subr.mxu0 0.0
    %361 = vmatpush1.msra.mxu0 0.0
    %362 = vmatprep.subr.mxu0 0.0
    %363 = vmatpush1.msra.mxu0 0.0
    %364 = vmatprep.subr.mxu0 0.0
    %365 = vmatpush1.msra.mxu0 0.0
    %366 = vmatprep.subr.mxu0 0.0
    %367 = vmatpush1.msra.mxu0 0.0
    %368 = vmatprep.mubr.f32.mxu0 0.0
    %369 = vmatmul.mubr.f32.gmra.mrb[0].mxu0 %v46
    %v370 = vpop.f32.mrb[0].mxu0
    %v371 = vadd.f32 0.0, %v370
    %v372 = vpop.f32.mrb[0].mxu0
    %373 = vmatprep.mubr.f32.mxu0 0.0
    %374 = vmatmul.mubr.f32.gmra.mrb[0].mxu0 %v49
    %v375 = vpop.f32.mrb[0].mxu0
    %v376 = vadd.f32 0.0, %v375
    %v377 = vpop.f32.mrb[0].mxu0
    %378 = vdwg.mxu0
    %v379 = vmul.f32 %v371, %v43
    %v380 = vmul.f32 %v376, %v44
    %v381 = vld [vmem:[%s5] sm:$0xff]
    %v382 = vld [vmem:[%s6] sm:$0xff]
    %v384 = vsel %vm130, %v379, 0
    %v387 = vsel %vm130, %v380, 0
    %389 = vmatprep.subr.mxu0 0.0
    %390 = vmatpush1.msra.mxu0 %v382
    %391 = vmatprep.subr.mxu0 0.0
    %392 = vmatpush1.msra.mxu0 0.0
    %393 = vmatprep.subr.mxu0 0.0
    %394 = vmatpush1.msra.mxu0 0.0
    %395 = vmatprep.subr.mxu0 0.0
    %396 = vmatpush1.msra.mxu0 0.0
    %397 = vmatprep.subr.mxu0 0.0
    %398 = vmatpush1.msra.mxu0 0.0
    %399 = vmatprep.subr.mxu0 0.0
    %400 = vmatpush1.msra.mxu0 0.0
    %401 = vmatprep.subr.mxu0 0.0
    %402 = vmatpush1.msra.mxu0 0.0
    %403 = vmatprep.subr.mxu0 0.0
    %404 = vmatpush1.msra.mxu0 0.0
    %405 = vmatprep.subr.mxu0 0.0
    %406 = vmatpush1.msra.mxu0 0.0
    %407 = vmatprep.subr.mxu0 0.0
    %408 = vmatpush1.msra.mxu0 0.0
    %409 = vmatprep.subr.mxu0 0.0
    %410 = vmatpush1.msra.mxu0 0.0
    %411 = vmatprep.subr.mxu0 0.0
    %412 = vmatpush1.msra.mxu0 0.0
    %413 = vmatprep.subr.mxu0 0.0
    %414 = vmatpush1.msra.mxu0 0.0
    %415 = vmatprep.subr.mxu0 0.0
    %416 = vmatpush1.msra.mxu0 0.0
    %417 = vmatprep.subr.mxu0 0.0
    %418 = vmatpush1.msra.mxu0 0.0
    %419 = vmatprep.subr.mxu0 0.0
    %420 = vmatpush1.msra.mxu0 0.0
    %421 = vmatprep.subr.mxu0 0.0
    %422 = vmatpush1.msra.mxu0 0.0
    %423 = vmatprep.subr.mxu0 0.0
    %424 = vmatpush1.msra.mxu0 0.0
    %425 = vmatprep.subr.mxu0 0.0
    %426 = vmatpush1.msra.mxu0 0.0
    %427 = vmatprep.subr.mxu0 0.0
    %428 = vmatpush1.msra.mxu0 0.0
    %429 = vmatprep.subr.mxu0 0.0
    %430 = vmatpush1.msra.mxu0 0.0
    %431 = vmatprep.subr.mxu0 0.0
    %432 = vmatpush1.msra.mxu0 0.0
    %433 = vmatprep.subr.mxu0 0.0
    %434 = vmatpush1.msra.mxu0 0.0
    %435 = vmatprep.subr.mxu0 0.0
    %436 = vmatpush1.msra.mxu0 0.0
    %437 = vmatprep.subr.mxu0 0.0
    %438 = vmatpush1.msra.mxu0 0.0
    %439 = vmatprep.subr.mxu0 0.0
    %440 = vmatpush1.msra.mxu0 0.0
    %441 = vmatprep.subr.mxu0 0.0
    %442 = vmatpush1.msra.mxu0 0.0
    %443 = vmatprep.subr.mxu0 0.0
    %444 = vmatpush1.msra.mxu0 0.0
    %445 = vmatprep.subr.mxu0 0.0
    %446 = vmatpush1.msra.mxu0 0.0
    %447 = vmatprep.subr.mxu0 0.0
    %448 = vmatpush1.msra.mxu0 0.0
    %449 = vmatprep.subr.mxu0 0.0
    %450 = vmatpush1.msra.mxu0 0.0
    %451 = vmatprep.subr.mxu0 0.0
    %452 = vmatpush1.msra.mxu0 0.0
    %453 = vmatprep.mubr.f32.mxu0 0.0
    %454 = vmatmul.mubr.f32.gmra.mrb[0].mxu0 %v384
    %v455 = vpop.f32.mrb[0].mxu0
    %v456 = vadd.f32 0.0, %v455
    %v457 = vpop.f32.mrb[0].mxu0
    %458 = vmatprep.mubr.f32.mxu0 0.0
    %459 = vmatmul.mubr.f32.gmra.mrb[0].mxu0 %v387
    %v460 = vpop.f32.mrb[0].mxu0
    %v461 = vadd.f32 0.0, %v460
    %v462 = vpop.f32.mrb[0].mxu0
    %463 = vdwg.mxu0
    %v465 = vsel %vm130, %v302, 0
    %v468 = vsel %vm130, %v303, 0
    %470 = vmatprep.subr.mxu0 0.0
    %471 = vmatpush1.msra.mxu0 %v381
    %472 = vmatprep.subr.mxu0 0.0
    %473 = vmatpush1.msra.mxu0 0.0
    %474 = vmatprep.subr.mxu0 0.0
    %475 = vmatpush1.msra.mxu0 0.0
    %476 = vmatprep.subr.mxu0 0.0
    %477 = vmatpush1.msra.mxu0 0.0
    %478 = vmatprep.subr.mxu0 0.0
    %479 = vmatpush1.msra.mxu0 0.0
    %480 = vmatprep.subr.mxu0 0.0
    %481 = vmatpush1.msra.mxu0 0.0
    %482 = vmatprep.subr.mxu0 0.0
    %483 = vmatpush1.msra.mxu0 0.0
    %484 = vmatprep.subr.mxu0 0.0
    %485 = vmatpush1.msra.mxu0 0.0
    %486 = vmatprep.subr.mxu0 0.0
    %487 = vmatpush1.msra.mxu0 0.0
    %488 = vmatprep.subr.mxu0 0.0
    %489 = vmatpush1.msra.mxu0 0.0
    %490 = vmatprep.subr.mxu0 0.0
    %491 = vmatpush1.msra.mxu0 0.0
    %492 = vmatprep.subr.mxu0 0.0
    %493 = vmatpush1.msra.mxu0 0.0
    %494 = vmatprep.subr.mxu0 0.0
    %495 = vmatpush1.msra.mxu0 0.0
    %496 = vmatprep.subr.mxu0 0.0
    %497 = vmatpush1.msra.mxu0 0.0
    %498 = vmatprep.subr.mxu0 0.0
    %499 = vmatpush1.msra.mxu0 0.0
    %500 = vmatprep.subr.mxu0 0.0
    %501 = vmatpush1.msra.mxu0 0.0
    %502 = vmatprep.subr.mxu0 0.0
    %503 = vmatpush1.msra.mxu0 0.0
    %504 = vmatprep.subr.mxu0 0.0
    %505 = vmatpush1.msra.mxu0 0.0
    %506 = vmatprep.subr.mxu0 0.0
    %507 = vmatpush1.msra.mxu0 0.0
    %508 = vmatprep.subr.mxu0 0.0
    %509 = vmatpush1.msra.mxu0 0.0
    %510 = vmatprep.subr.mxu0 0.0
    %511 = vmatpush1.msra.mxu0 0.0
    %512 = vmatprep.subr.mxu0 0.0
    %513 = vmatpush1.msra.mxu0 0.0
    %514 = vmatprep.subr.mxu0 0.0
    %515 = vmatpush1.msra.mxu0 0.0
    %516 = vmatprep.subr.mxu0 0.0
    %517 = vmatpush1.msra.mxu0 0.0
    %518 = vmatprep.subr.mxu0 0.0
    %519 = vmatpush1.msra.mxu0 0.0
    %520 = vmatprep.subr.mxu0 0.0
    %521 = vmatpush1.msra.mxu0 0.0
    %522 = vmatprep.subr.mxu0 0.0
    %523 = vmatpush1.msra.mxu0 0.0
    %524 = vmatprep.subr.mxu0 0.0
    %525 = vmatpush1.msra.mxu0 0.0
    %526 = vmatprep.subr.mxu0 0.0
    %527 = vmatpush1.msra.mxu0 0.0
    %528 = vmatprep.subr.mxu0 0.0
    %529 = vmatpush1.msra.mxu0 0.0
    %530 = vmatprep.subr.mxu0 0.0
    %531 = vmatpush1.msra.mxu0 0.0
    %532 = vmatprep.subr.mxu0 0.0
    %533 = vmatpush1.msra.mxu0 0.0
    %534 = vmatprep.mubr.f32.mxu0 0.0
    %535 = vmatmul.mubr.f32.gmra.mrb[0].mxu0 %v465
    %v536 = vpop.f32.mrb[0].mxu0
    %v537 = vadd.f32 %v456, %v536
    %v538 = vpop.f32.mrb[0].mxu0
    %539 = vmatprep.mubr.f32.mxu0 0.0
    %540 = vmatmul.mubr.f32.gmra.mrb[0].mxu0 %v468
    %v541 = vpop.f32.mrb[0].mxu0
    %v542 = vadd.f32 %v461, %v541
    %v543 = vpop.f32.mrb[0].mxu0
    %544 = vdwg.mxu0
    %v545 = vld [vmem:[%s7] sm:$0x1]
    %v547 = vlaneseq
    %v548 = vshrl.u32 %v547, 7
    %v549 = vsub.s32 0, %v548
    %v550 = vrot.slane %v545, %v549
    %v552 = vadd.f32 %v537, %v550
    %v553 = vadd.f32 %v542, %v550
    %vm554 = vcmask 31744
    %v555 = vsel %vm554, %v552, 0.0
    %v556 = vsel %vm554, %v553, 0.0
    %v557 = vadd.f32 %v555, %v556
    %v558 = vrot.slane %v557, 4
    %v559 = vadd.f32 %v557, %v558
    %v560 = vrot.slane %v559, 2
    %v561 = vadd.f32 %v559, %v560
    %v562 = vrot.slane %v561, 1
    %v563 = vadd.f32 %v561, %v562
    %v564 = vrcp.pop 16.0
    %v565 = vmul.f32 %v563, %v564
    %vm566 = vcmask 24576
    %567 = vst.msk [vmem:[#allocation2] sm:$0x1] %vm566, %v565
    // Predicated region
    $region34: #{tpu_custom_call.1} parent=1 // pred_check
      _
    $region35: #{tpu_custom_call.1} parent=1 // pred_check_branch
      %569 = sbr.rel (0) target = $region37
    $region36: #{tpu_custom_call.1} parent=1 // pred_region
      %s571 = ssub.s32 16, 16
      %572 = vsyncadd [#allocation3], %s571
      %s574 = sshll.u32 [#allocation2], 4
      %s575 = int_to_ptr.vmem [resolvable:$true] %s574
      %577 = dma.vmem_to_hbm [thread:$0]  %s575, 16, %s8, [#allocation3]
    $region37: #{tpu_custom_call.1} parent=1 // pred_fallthru
      _
    // Predicated region
    $region38: #{tpu_custom_call.1} parent=1 // pred_check
      _
    $region39: #{tpu_custom_call.1} parent=1 // pred_check_branch
      %579 = sbr.rel (0) target = $region41
    $region40: #{tpu_custom_call.1} parent=1 // pred_region
      %580 = dma.done [#allocation3], 16
    $region41: #{tpu_custom_call.1} parent=1 // pred_fallthru
      _
    %581 = vsyncpa [#allocation3], 1

</llo_original>
